<compile_context>
chip_gen: v7x
topology: tpu7x:2x2x1
jax: 0.10.0
libtpu: 0.0.40
codegen_flags: <defaults>
</compile_context>

<pallas_src>
import functools

import jax
import jax.numpy as jnp
import numpy as np
from jax import lax
from jax.experimental import pallas as pl
from jax.experimental.pallas import tpu as pltpu


# ----------------------------------------------------------------------------
# Small helpers
# ----------------------------------------------------------------------------
def _round_up(x, m):
    return ((x + m - 1) // m) * m


def _cdiv(a, b):
    return -(-a // b)


def _sublane_unit(dtype):
    """Minimum second-to-last block dim for this dtype (f32: 8, bf16: 16, int8: 32)."""
    return max(8, 32 // jnp.dtype(dtype).itemsize)


@functools.lru_cache(maxsize=None)
def _tpu_config():
    """(tile_budget_bytes, vmem_limit_bytes, num_tensorcores, big_vmem)."""
    cap = None
    try:
        cap = int(pltpu.get_tpu_info().vmem_capacity_bytes)
    except Exception:
        cap = None
    if cap is None:
        # Unknown part: conservative (v7x-sized VMEM), single-TC scheduling.
        return 28 * 1024 * 1024, 44 * 1024 * 1024, 1, False
    big_vmem = cap >= 96 * 1024 * 1024          # v5e/v6e: 128 MiB; v7x: 64 MiB
    num_tc = 1 if big_vmem else 2               # v5e/v6e: 1 TC;     v7x: 2 TCs
    budget = min(int(cap * 0.55), 80 * 1024 * 1024)
    limit = min(int(cap * 0.75), 100 * 1024 * 1024)
    return budget, limit, num_tc, big_vmem


def _probe_buffered_once():
    """Check that single-buffered resident blocks (pl.Buffered(1)) lower & run."""
    try:
        def k(x_ref, c_ref, o_ref):
            o_ref[...] = x_ref[...] + c_ref[...]

        f = pl.pallas_call(
            k,
            out_shape=jax.ShapeDtypeStruct((16, 128), jnp.float32),
            grid=(2,),
            in_specs=[
                pl.BlockSpec((8, 128), lambda i: (i, 0)),
                pl.BlockSpec((8, 128), lambda i: (0, 0),
                             pipeline_mode=pl.Buffered(1)),
            ],
            out_specs=pl.BlockSpec((8, 128), lambda i: (i, 0)),
        )
        x = jnp.zeros((16, 128), jnp.float32)
        c = jnp.ones((8, 128), jnp.float32)
        jax.block_until_ready(f(x, c))
        return True
    except Exception:
        return False


@functools.lru_cache(maxsize=None)
def _buffered1_supported():
    return _probe_buffered_once()


def _resident_spec(block_shape):
    """Constant-index (VMEM-resident) block; single-buffered when supported."""
    idx = lambda *args: (0,) * len(block_shape)
    if _buffered1_supported():
        return pl.BlockSpec(block_shape, idx, pipeline_mode=pl.Buffered(1))
    return pl.BlockSpec(block_shape, idx)


def _choose_tm(M, tm_cap, num_tc, unit):
    """Balanced M tile: minimal padding, split across TCs only when it helps."""
    m_u = _round_up(max(M, 1), unit)
    tm_cap = int(min(max(tm_cap, unit), 512))
    tm_cap = max(unit, (tm_cap // unit) * unit)
    n_blocks = _cdiv(m_u, tm_cap)
    if num_tc >= 2:
        # v7x: give each TensorCore >= 2 blocks when M is large enough so x-DMA can
        # pipeline against compute on both cores, keeping per-core tm >= 128.
        if m_u >= 4 * 128:
            n_blocks = max(n_blocks, 2 * num_tc)
        elif m_u >= 2 * 128:
            n_blocks = max(n_blocks, num_tc)
    tm = _round_up(_cdiv(m_u, n_blocks), unit)
    m_pad = _round_up(m_u, tm)
    return tm, m_pad


# ----------------------------------------------------------------------------
# Kernel A: weight-resident linear.  (N, K) weight and (1, N) bias stay in VMEM
# for all grid steps; only M is tiled.   y_tile = x_tile @ W^T + b
# ----------------------------------------------------------------------------
def _linear_resident_kernel(x_ref, w_ref, b_ref, o_ref):
    acc = lax.dot_general(
        x_ref[...], w_ref[...],
        dimension_numbers=(((1,), (1,)), ((), ())),   # NT form, no transpose op
        preferred_element_type=jnp.float32,
    )
    o_ref[...] = (acc + b_ref[...]).astype(o_ref.dtype)


# ----------------------------------------------------------------------------
# Kernel B: fused width-expansion fold (no-residual path).
#   y_tile = (x_small + x_extra @ T) @ W^T + b,    T and W VMEM-resident.
# ----------------------------------------------------------------------------
def _fold_resident_kernel(x_ref, t_ref, w_ref, b_ref, o_ref, *, si):
    xb = x_ref[...]
    x_small = xb[:, :si]
    x_extra = xb[:, si:]
    x_eff = x_small + lax.dot_general(
        x_extra, t_ref[...],
        dimension_numbers=(((1,), (0,)), ((), ())),
        preferred_element_type=jnp.float32,
    ).astype(x_small.dtype)
    acc = lax.dot_general(
        x_eff, w_ref[...],
        dimension_numbers=(((1,), (1,)), ((), ())),
        preferred_element_type=jnp.float32,
    )
    o_ref[...] = (acc + b_ref[...]).astype(o_ref.dtype)


# ----------------------------------------------------------------------------
# Kernel C: general tiled linear fallback (K-last reduction grid).
# ----------------------------------------------------------------------------
def _tiled_kernel_accum_out(x_ref, w_ref, b_ref, o_ref):
    # f32 output: accumulate directly into the revisited output block (no scratch).
    k = pl.program_id(2)

    @pl.when(k == 0)
    def _():
        o_ref[...] = jnp.broadcast_to(b_ref[...], o_ref.shape).astype(o_ref.dtype)

    o_ref[...] += lax.dot_general(
        x_ref[...], w_ref[...],
        dimension_numbers=(((1,), (1,)), ((), ())),
        preferred_element_type=jnp.float32,
    )


def _tiled_kernel_scratch(x_ref, w_ref, b_ref, o_ref, acc_ref):
    k = pl.program_id(2)

    @pl.when(k == 0)
    def _():
        acc_ref[...] = jnp.zeros_like(acc_ref)

    acc_ref[...] += lax.dot_general(
        x_ref[...], w_ref[...],
        dimension_numbers=(((1,), (1,)), ((), ())),
        preferred_element_type=jnp.float32,
    )

    @pl.when(k == pl.num_programs(2) - 1)
    def _():
        o_ref[...] = (acc_ref[...] + b_ref[...]).astype(o_ref.dtype)


def _tiled_linear(x, w, b):
    M, K = x.shape
    N, _ = w.shape
    dtype = x.dtype
    isz = jnp.dtype(dtype).itemsize
    unit = _sublane_unit(dtype)
    _, vmem_limit, num_tc, big_vmem = _tpu_config()

    # Generation-aware fallback tiles (512-wide tiles measured ~85% of HBM roofline).
    tn = min(512, _round_up(N, 128))
    tk = min(1024 if big_vmem else 512, _round_up(K, 128))
    tm, M_pad = _choose_tm(M, 512 if big_vmem else 256, num_tc, unit)

    N_pad = _round_up(N, tn)
    K_pad = _round_up(K, tk)
    x_p = jnp.pad(x, ((0, M_pad - M), (0, K_pad - K))) if (M_pad, K_pad) != (M, K) else x
    w_p = jnp.pad(w, ((0, N_pad - N), (0, K_pad - K))) if (N_pad, K_pad) != (N, K) else w
    b_p = (jnp.pad(b, (0, N_pad - N)) if N_pad != N else b).reshape(1, N_pad)

    use_accum_out = dtype == jnp.float32
    kernel = _tiled_kernel_accum_out if use_accum_out else _tiled_kernel_scratch
    scratch = [] if use_accum_out else [pltpu.VMEM((tm, tn), jnp.float32)]

    cost = pl.CostEstimate(
        flops=2 * M_pad * N_pad * K_pad,
        transcendentals=0,
        bytes_accessed=isz * (M_pad * K_pad + (M_pad // tm) * N_pad * K_pad
                              + M_pad * N_pad + N_pad),
    )
    y = pl.pallas_call(
        kernel,
        out_shape=jax.ShapeDtypeStruct((M_pad, N_pad), dtype),
        grid_spec=pltpu.PrefetchScalarGridSpec(
            num_scalar_prefetch=0,
            grid=(M_pad // tm, N_pad // tn, K_pad // tk),
            in_specs=[
                pl.BlockSpec((tm, tk), lambda i, j, k: (i, k)),  # x
                pl.BlockSpec((tn, tk), lambda i, j, k: (j, k)),  # weight
                pl.BlockSpec((1, tn), lambda i, j, k: (0, j)),   # bias
            ],
            out_specs=pl.BlockSpec((tm, tn), lambda i, j, k: (i, j)),
            scratch_shapes=scratch,
        ),
        compiler_params=pltpu.CompilerParams(
            dimension_semantics=("parallel", "parallel", "arbitrary"),
            vmem_limit_bytes=vmem_limit,
        ),
        cost_estimate=cost,
    )(x_p, w_p, b_p)
    return y[:M, :N]


# ----------------------------------------------------------------------------
# Wrapper: y = x @ w.T + b   (F.linear).  x: (M, K), w: (N, K), b: (N,)
# ----------------------------------------------------------------------------
@jax.jit
def pallas_linear(x, w, b):
    M, K = x.shape
    N, K2 = w.shape
    assert K == K2 and b.shape == (N,)
    dtype = x.dtype
    isz = jnp.dtype(dtype).itemsize
    unit = _sublane_unit(dtype)
    budget, vmem_limit, num_tc, _ = _tpu_config()
    rf = 1 if _buffered1_supported() else 2      # resident buffer factor

    # ------------------- weight-resident fast path --------------------------
    fixed_bytes = rf * (N * K + N) * isz                 # resident weight + bias
    per_row = 2 * (K + N) * isz + 4 * N                  # x + out (2-buf) + f32 acc
    avail = budget - fixed_bytes

    if avail >= unit * per_row:
        tm, M_pad = _choose_tm(M, avail // per_row, num_tc, unit)
        x_p = jnp.pad(x, ((0, M_pad - M), (0, 0))) if M_pad != M else x
        b2d = b.reshape(1, N)

        cost = pl.CostEstimate(
            flops=2 * M_pad * N * K,
            transcendentals=0,
            bytes_accessed=isz * (M_pad * K + N * K + M_pad * N + N),
        )
        y = pl.pallas_call(
            _linear_resident_kernel,
            out_shape=jax.ShapeDtypeStruct((M_pad, N), dtype),
            grid_spec=pltpu.PrefetchScalarGridSpec(
                num_scalar_prefetch=0,
                grid=(M_pad // tm,),
                in_specs=[
                    pl.BlockSpec((tm, K), lambda i: (i, 0)),  # x, streamed over M
                    _resident_spec((N, K)),                   # weight, VMEM-resident
                    _resident_spec((1, N)),                   # bias, VMEM-resident
                ],
                out_specs=pl.BlockSpec((tm, N), lambda i: (i, 0)),
            ),
            compiler_params=pltpu.CompilerParams(
                dimension_semantics=("parallel",),
                vmem_limit_bytes=vmem_limit,
            ),
            cost_estimate=cost,
        )(x_p, w, b2d)
        return y[:M] if M_pad != M else y

    # ------------------- general tiled fallback ------------------------------
    return _tiled_linear(x, w, b)


# ----------------------------------------------------------------------------
# Wrapper: fused fold.  y = (x[:, :si] + x[:, si:] @ T) @ W^T + b
#   x: (M, si + extra), T: (extra, si), W: (N, si), b: (N,)
# ----------------------------------------------------------------------------
@jax.jit
def pallas_linear_fold(x, t, w, b):
    M, K_in = x.shape
    extra, si = t.shape
    N, si2 = w.shape
    assert si == si2 and K_in == si + extra and b.shape == (N,)
    dtype = x.dtype
    isz = jnp.dtype(dtype).itemsize
    unit = _sublane_unit(dtype)
    budget, vmem_limit, num_tc, _ = _tpu_config()
    rf = 1 if _buffered1_supported() else 2

    # Fuse only when the split of x along lanes is 128-aligned (free in-kernel slice)
    # and T + W + bias fit resident in VMEM.
    fused_ok = (si % 128 == 0) and (extra % 128 == 0)
    fixed_bytes = rf * (N * si + extra * si + N) * isz
    per_row = 2 * (K_in + N) * isz + 4 * (N + 2 * si)     # + f32 acc & x_eff temps
    avail = budget - fixed_bytes

    if fused_ok and avail >= unit * per_row:
        tm, M_pad = _choose_tm(M, avail // per_row, num_tc, unit)
        x_p = jnp.pad(x, ((0, M_pad - M), (0, 0))) if M_pad != M else x
        b2d = b.reshape(1, N)

        cost = pl.CostEstimate(
            flops=2 * M_pad * (extra * si + N * si),
            transcendentals=0,
            bytes_accessed=isz * (M_pad * K_in + (N + extra) * si + M_pad * N + N),
        )
        kernel = functools.partial(_fold_resident_kernel, si=si)
        y = pl.pallas_call(
            kernel,
            out_shape=jax.ShapeDtypeStruct((M_pad, N), dtype),
            grid_spec=pltpu.PrefetchScalarGridSpec(
                num_scalar_prefetch=0,
                grid=(M_pad // tm,),
                in_specs=[
                    pl.BlockSpec((tm, K_in), lambda i: (i, 0)),  # x, streamed over M
                    _resident_spec((extra, si)),                 # T, VMEM-resident
                    _resident_spec((N, si)),                     # W, VMEM-resident
                    _resident_spec((1, N)),                      # bias, VMEM-resident
                ],
                out_specs=pl.BlockSpec((tm, N), lambda i: (i, 0)),
            ),
            compiler_params=pltpu.CompilerParams(
                dimension_semantics=("parallel",),
                vmem_limit_bytes=vmem_limit,
            ),
            cost_estimate=cost,
        )(x_p, t, w, b2d)
        return y[:M] if M_pad != M else y

    # Fused path doesn't apply: fold in XLA, then run the plain Pallas linear.
    x_eff = x[:, :si] + jnp.dot(x[:, si:], t, precision=lax.Precision.HIGHEST)
    return pallas_linear(x_eff, w, b)


# ----------------------------------------------------------------------------
# TransHeadLinear forward (parameter plumbing in plain JAX, matmuls in Pallas)
# ----------------------------------------------------------------------------
def trans_head_linear_forward(x, params, *, residual):
    """x: (batch, seq, in_features) -> (batch, seq, out_features)."""
    w_small = params["weight"]          # (out, small_in)
    b_small = params["bias"]            # (out,)
    t_w = params.get("trans_weight")    # (in - small_in, small_in) or None

    out_features, small_in = w_small.shape
    batch, seq, in_features = x.shape
    x2d = x.reshape(batch * seq, in_features)

    has_expand = t_w is not None and t_w.shape[0] > 0

    if has_expand and not residual:
        # x @ [W | W T^T]^T == (x_small + x_extra @ T) @ W^T  -- fused in-kernel.
        y2d = pallas_linear_fold(x2d, t_w, w_small, b_small)
        return y2d.reshape(batch, seq, out_features)

    # Residual path (or no expansion): build W_full with XLA (the expansion matmul
    # is tiny), then one Pallas linear.
    # TODO(synk): for inference with static params, cache (w_full, b_full) outside
    # the per-forward path to avoid re-materializing the full weight each call.
    if has_expand:
        w_full = jnp.concatenate([w_small, jnp.dot(w_small, t_w.T)], axis=1)
    else:
        w_full = w_small
    b_full = b_small
    if residual:
        rw = params["residual_weight"]
        assert rw.shape == w_full.shape, (rw.shape, w_full.shape)
        w_full = w_full + rw
        b_full = b_full + params["residual_bias"]

    y2d = pallas_linear(x2d, w_full, b_full)
    return y2d.reshape(batch, seq, out_features)


# ----------------------------------------------------------------------------
# Deterministic parameter construction (mirrors the PyTorch __init__ shapes)
# ----------------------------------------------------------------------------
def init_params(key, *, small_in, in_features, out_features,
                residual, residual_noise, dtype=jnp.float32):
    k_w, k_b, k_t, k_rw, k_rb = jax.random.split(key, 5)

    bound = 1.0 / np.sqrt(small_in)
    weight = jax.random.uniform(k_w, (out_features, small_in), dtype,
                                minval=-bound, maxval=bound)
    bias = jax.random.uniform(k_b, (out_features,), dtype,
                              minval=-bound, maxval=bound)

    # TransWidthParams.trans_weight, init_scheme='rand':
    #   uniform [0,1) then row-normalized by its sum over the last dim.
    extra = in_features - small_in
    if extra > 0:
        tw = jax.random.uniform(k_t, (extra, small_in), dtype)
        tw = tw / jnp.sum(tw, axis=-1, keepdims=True)
    else:
        tw = None

    params = {"weight": weight, "bias": bias, "trans_weight": tw}

    if residual:
        params["residual_weight"] = jax.random.uniform(
            k_rw, (out_features, in_features), dtype,
            minval=-residual_noise, maxval=residual_noise)
        params["residual_bias"] = jax.random.uniform(
            k_rb, (out_features,), dtype,
            minval=-residual_noise, maxval=residual_noise)
    return params


# ----------------------------------------------------------------------------
# Pure-jnp reference (for correctness check)
# ----------------------------------------------------------------------------
def reference_forward(x, params, *, residual):
    w = params["weight"]
    b = params["bias"]
    t_w = params["trans_weight"]
    if t_w is not None and t_w.shape[0] > 0:
        w = jnp.concatenate([w, w @ t_w.T], axis=1)
    if residual:
        w = w + params["residual_weight"]
        b = b + params["residual_bias"]
    return jnp.einsum("bsi,oi->bso", x, w) + b


if __name__ == "__main__":
    batch, seq = 2, 8
    small_in = 128          # hidden dim of the base ("small") model weight
    in_features = 256       # expanded input width (extra = 128)
    out_features = 256
    residual_noise = 0.01

    key = jax.random.PRNGKey(0)
    k_params, k_x = jax.random.split(key)
    x = jax.random.normal(k_x, (batch, seq, in_features), jnp.float32)

    for residual in (True, False):
        params = init_params(
            k_params,
            small_in=small_in,
            in_features=in_features,
            out_features=out_features,
            residual=residual,
            residual_noise=residual_noise,
        )

        y = jax.block_until_ready(
            trans_head_linear_forward(x, params, residual=residual))
        y_ref = jax.block_until_ready(
            reference_forward(x, params, residual=residual))

        assert y.shape == (batch, seq, out_features)
        np.testing.assert_allclose(np.asarray(y), np.asarray(y_ref),
                                   rtol=2e-4, atol=2e-4)

    print("KERNEL_OK")
</pallas_src>

<mosaic_0001>
module attributes {stable_mosaic.version = 11 : i64} {
  func.func @_linear_resident_kernel(%arg0: i32, %arg1: memref<16x256xf32, #tpu.memory_space<vmem>>, %arg2: memref<256x256xf32, #tpu.memory_space<vmem>>, %arg3: memref<1x256xf32, #tpu.memory_space<vmem>>, %arg4: memref<16x256xf32, #tpu.memory_space<vmem>>) attributes {dimension_semantics = [#tpu.dimension_semantics<parallel>], iteration_bounds = array<i64: 1>, scalar_prefetch = 0 : i64, scratch_operands = 0 : i64, tpu.core_type = #tpu.core_type<tc>, window_params = [{transform_indices = @transform_0, window_bounds = array<i64: 16, 256>}, {pipeline_mode = #tpu.pipeline_mode<synchronous>, transform_indices = @transform_1, window_bounds = array<i64: 256, 256>}, {pipeline_mode = #tpu.pipeline_mode<synchronous>, transform_indices = @transform_2, window_bounds = array<i64: 1, 256>}, {transform_indices = @transform_3, window_bounds = array<i64: 16, 256>}]} {
    %c0 = arith.constant 0 : index
    %c0_0 = arith.constant 0 : index
    %0 = vector.load %arg1[%c0, %c0_0] : memref<16x256xf32, #tpu.memory_space<vmem>>, vector<16x256xf32>
    %c0_1 = arith.constant 0 : index
    %c0_2 = arith.constant 0 : index
    %1 = vector.load %arg2[%c0_1, %c0_2] : memref<256x256xf32, #tpu.memory_space<vmem>>, vector<256x256xf32>
    %cst = arith.constant dense<0.000000e+00> : vector<16x256xf32>
    %2 = tpu.matmul %0, %1, %cst {dimension_numbers = #tpu.dot_dimension_numbers<[1], [1], [0], [0], [0, 0, 1, 0], [], []>} : vector<16x256xf32>, vector<256x256xf32>, vector<16x256xf32> -> vector<16x256xf32>
    %c0_3 = arith.constant 0 : index
    %c0_4 = arith.constant 0 : index
    %3 = vector.load %arg3[%c0_3, %c0_4] : memref<1x256xf32, #tpu.memory_space<vmem>>, vector<1x256xf32>
    %4 = vector.broadcast %3 : vector<1x256xf32> to vector<16x256xf32>
    %5 = arith.addf %2, %4 : vector<16x256xf32>
    %c0_5 = arith.constant 0 : index
    %c0_6 = arith.constant 0 : index
    %6 = vector.load %arg4[%c0_5, %c0_6] : memref<16x256xf32, #tpu.memory_space<vmem>>, vector<16x256xf32>
    tpu.vector_store %arg4[%c0_5, %c0_6], %5 {strides = array<i32>} : memref<16x256xf32, #tpu.memory_space<vmem>>, vector<16x256xf32>,
    return
  }
  func.func @transform_0(%arg0: i32) -> (i32, i32) {
    %c0_i32 = arith.constant 0 : i32
    %c0_i32_0 = arith.constant 0 : i32
    return %arg0, %c0_i32 : i32, i32
  }
  func.func @transform_1(%arg0: i32) -> (i32, i32) {
    %c0_i32 = arith.constant 0 : i32
    %c0_i32_0 = arith.constant 0 : i32
    %c0_i32_1 = arith.constant 0 : i32
    return %c0_i32, %c0_i32_0 : i32, i32
  }
  func.func @transform_2(%arg0: i32) -> (i32, i32) {
    %c0_i32 = arith.constant 0 : i32
    %c0_i32_0 = arith.constant 0 : i32
    %c0_i32_1 = arith.constant 0 : i32
    return %c0_i32, %c0_i32_0 : i32, i32
  }
  func.func @transform_3(%arg0: i32) -> (i32, i32) {
    %c0_i32 = arith.constant 0 : i32
    %c0_i32_0 = arith.constant 0 : i32
    return %arg0, %c0_i32 : i32, i32
  }
}

</mosaic_0001>

<llo_original>
// kernel: pallas_linear.1
$region0: #{pallas_linear.1}
  #allocation0 [shape = 'u32[]', space=smem, size = 0x4, offset = 0x4, fixed_abs, tag = 'smem constant byte address 0x4 - core index']
  #allocation1 [shape = 'u32[144,128]{1,0:T(1,128)}', space=vmem, size = 0x12000, scoped, tag = 'internal scratch']
  %s0 = inlined_call_operand.hbm [shape: f32[16,256], index: 0, kind: input, shape index: {}]
  %s1 = inlined_call_operand.hbm [shape: f32[256,256], index: 1, kind: input, shape index: {}]
  %s2 = inlined_call_operand.vmem [shape: f32[1,256], index: 2, kind: input, shape index: {}]
  %s3 = inlined_call_operand.hbm [shape: f32[16,256], index: 3, kind: output, shape index: {}]
  %s4 = sld [smem:[#allocation0]]
  $region30: #{pallas_linear.1} parent=0
    _
  %s6 = ssub.s32 1, %s4
  %s7 = scalar_select 0, %s6, %s4
  $region1: #{pallas_linear.1} parent=0
    #allocation2 [shape = 'u8[16384]{0}', space=vmem, size = 0x4000, scoped, tag = 'input window, operand 0, single buffered']
    #allocation3 [shape = 's32[1]{0}', space=sflag, size = 0x4, scoped, tag = 'scoped memory for pallas_linear.1']
    #allocation4 [shape = 's32[1]{0}', space=sflag, size = 0x4, scoped, tag = 'scoped memory for pallas_linear.1']
    #allocation5 [shape = 'u8[262144]{0}', space=vmem, size = 0x40000, scoped, tag = 'input window, operand 1, single buffered']
    #allocation6 [shape = 's32[1]{0}', space=sflag, size = 0x4, scoped, tag = 'scoped memory for pallas_linear.1']
    #allocation7 [shape = 'u8[16384]{0}', space=vmem, size = 0x4000, scoped, tag = 'output window, operand 0, single buffered']
    %8 = vsyncpa [#allocation3], 0
    %9 = vsyncpa [#allocation6], 0
    %10 = vsyncpa [#allocation4], 0
    // Predicated region
    $region2: #{pallas_linear.1} parent=1 // pred_check
      _
    $region3: #{pallas_linear.1} parent=1 // pred_check_branch
      %12 = sbr.rel (0) target = $region5
    $region4: #{pallas_linear.1} parent=1 // pred_region
      %s14 = ssub.s32 512, 512
      %15 = vsyncadd [#allocation3], %s14
      %s16 = sshll.u32 [#allocation2], 4
      %s17 = int_to_ptr.vmem [resolvable:$true] %s16
      %22 = dma.hbm_to_vmem [thread:$0]  %s0, 512, %s17, [#allocation3], 256, 256, 16
    $region5: #{pallas_linear.1} parent=1 // pred_fallthru
      _
    // Predicated region
    $region6: #{pallas_linear.1} parent=1 // pred_check
      _
    $region7: #{pallas_linear.1} parent=1 // pred_check_branch
      %24 = sbr.rel (0) target = $region9
    $region8: #{pallas_linear.1} parent=1 // pred_region
      %s26 = ssub.s32 8192, 8192
      %27 = vsyncadd [#allocation6], %s26
      %s28 = sshll.u32 [#allocation5], 4
      %s29 = int_to_ptr.vmem [resolvable:$true] %s28
      %34 = dma.hbm_to_vmem [thread:$0]  %s1, 8192, %s29, [#allocation6], 256, 256, 16
    $region9: #{pallas_linear.1} parent=1 // pred_fallthru
      _
    // Predicated region
    $region10: #{pallas_linear.1} parent=1 // pred_check
      _
    $region11: #{pallas_linear.1} parent=1 // pred_check_branch
      %36 = sbr.rel (0) target = $region13
    $region12: #{pallas_linear.1} parent=1 // pred_region
      _
    $region13: #{pallas_linear.1} parent=1 // pred_fallthru
      _
    // Predicated region
    $region14: #{pallas_linear.1} parent=1 // pred_check
      _
    $region15: #{pallas_linear.1} parent=1 // pred_check_branch
      %38 = sbr.rel (0) target = $region17
    $region16: #{pallas_linear.1} parent=1 // pred_region
      %39 = dma.done [#allocation3], 512
    $region17: #{pallas_linear.1} parent=1 // pred_fallthru
      _
    // Predicated region
    $region18: #{pallas_linear.1} parent=1 // pred_check
      _
    $region19: #{pallas_linear.1} parent=1 // pred_check_branch
      %41 = sbr.rel (0) target = $region21
    $region20: #{pallas_linear.1} parent=1 // pred_region
      %42 = dma.done [#allocation6], 8192
    $region21: #{pallas_linear.1} parent=1 // pred_fallthru
      _
    %v43 = vld [vmem:[#allocation2] sm:$0xff]
    %v44 = vld [vmem:[#allocation2 + $0x8] sm:$0xff]
    %v45 = vld [vmem:[#allocation2 + $0x10] sm:$0xff]
    %v46 = vld [vmem:[#allocation2 + $0x18] sm:$0xff]
    %v47 = vld [vmem:[#allocation5] sm:$0xff]
    %v48 = vld [vmem:[#allocation5 + $0x8] sm:$0xff]
    %v49 = vld [vmem:[#allocation5 + $0x10] sm:$0xff]
    %v50 = vld [vmem:[#allocation5 + $0x18] sm:$0xff]
    %v51 = vld [vmem:[#allocation5 + $0x20] sm:$0xff]
    %v52 = vld [vmem:[#allocation5 + $0x28] sm:$0xff]
    %v53 = vld [vmem:[#allocation5 + $0x30] sm:$0xff]
    %v54 = vld [vmem:[#allocation5 + $0x38] sm:$0xff]
    %v55 = vld [vmem:[#allocation5 + $0x40] sm:$0xff]
    %v56 = vld [vmem:[#allocation5 + $0x48] sm:$0xff]
    %v57 = vld [vmem:[#allocation5 + $0x50] sm:$0xff]
    %v58 = vld [vmem:[#allocation5 + $0x58] sm:$0xff]
    %v59 = vld [vmem:[#allocation5 + $0x60] sm:$0xff]
    %v60 = vld [vmem:[#allocation5 + $0x68] sm:$0xff]
    %v61 = vld [vmem:[#allocation5 + $0x70] sm:$0xff]
    %v62 = vld [vmem:[#allocation5 + $0x78] sm:$0xff]
    %v63 = vld [vmem:[#allocation5 + $0x80] sm:$0xff]
    %v64 = vld [vmem:[#allocation5 + $0x88] sm:$0xff]
    %v65 = vld [vmem:[#allocation5 + $0x90] sm:$0xff]
    %v66 = vld [vmem:[#allocation5 + $0x98] sm:$0xff]
    %v67 = vld [vmem:[#allocation5 + $0xa0] sm:$0xff]
    %v68 = vld [vmem:[#allocation5 + $0xa8] sm:$0xff]
    %v69 = vld [vmem:[#allocation5 + $0xb0] sm:$0xff]
    %v70 = vld [vmem:[#allocation5 + $0xb8] sm:$0xff]
    %v71 = vld [vmem:[#allocation5 + $0xc0] sm:$0xff]
    %v72 = vld [vmem:[#allocation5 + $0xc8] sm:$0xff]
    %v73 = vld [vmem:[#allocation5 + $0xd0] sm:$0xff]
    %v74 = vld [vmem:[#allocation5 + $0xd8] sm:$0xff]
    %v75 = vld [vmem:[#allocation5 + $0xe0] sm:$0xff]
    %v76 = vld [vmem:[#allocation5 + $0xe8] sm:$0xff]
    %v77 = vld [vmem:[#allocation5 + $0xf0] sm:$0xff]
    %v78 = vld [vmem:[#allocation5 + $0xf8] sm:$0xff]
    %v79 = vld [vmem:[#allocation5 + $0x100] sm:$0xff]
    %v80 = vld [vmem:[#allocation5 + $0x108] sm:$0xff]
    %v81 = vld [vmem:[#allocation5 + $0x110] sm:$0xff]
    %v82 = vld [vmem:[#allocation5 + $0x118] sm:$0xff]
    %v83 = vld [vmem:[#allocation5 + $0x120] sm:$0xff]
    %v84 = vld [vmem:[#allocation5 + $0x128] sm:$0xff]
    %v85 = vld [vmem:[#allocation5 + $0x130] sm:$0xff]
    %v86 = vld [vmem:[#allocation5 + $0x138] sm:$0xff]
    %v87 = vld [vmem:[#allocation5 + $0x140] sm:$0xff]
    %v88 = vld [vmem:[#allocation5 + $0x148] sm:$0xff]
    %v89 = vld [vmem:[#allocation5 + $0x150] sm:$0xff]
    %v90 = vld [vmem:[#allocation5 + $0x158] sm:$0xff]
    %v91 = vld [vmem:[#allocation5 + $0x160] sm:$0xff]
    %v92 = vld [vmem:[#allocation5 + $0x168] sm:$0xff]
    %v93 = vld [vmem:[#allocation5 + $0x170] sm:$0xff]
    %v94 = vld [vmem:[#allocation5 + $0x178] sm:$0xff]
    %v95 = vld [vmem:[#allocation5 + $0x180] sm:$0xff]
    %v96 = vld [vmem:[#allocation5 + $0x188] sm:$0xff]
    %v97 = vld [vmem:[#allocation5 + $0x190] sm:$0xff]
    %v98 = vld [vmem:[#allocation5 + $0x198] sm:$0xff]
    %v99 = vld [vmem:[#allocation5 + $0x1a0] sm:$0xff]
    %v100 = vld [vmem:[#allocation5 + $0x1a8] sm:$0xff]
    %v101 = vld [vmem:[#allocation5 + $0x1b0] sm:$0xff]
    %v102 = vld [vmem:[#allocation5 + $0x1b8] sm:$0xff]
    %v103 = vld [vmem:[#allocation5 + $0x1c0] sm:$0xff]
    %v104 = vld [vmem:[#allocation5 + $0x1c8] sm:$0xff]
    %v105 = vld [vmem:[#allocation5 + $0x1d0] sm:$0xff]
    %v106 = vld [vmem:[#allocation5 + $0x1d8] sm:$0xff]
    %v107 = vld [vmem:[#allocation5 + $0x1e0] sm:$0xff]
    %v108 = vld [vmem:[#allocation5 + $0x1e8] sm:$0xff]
    %v109 = vld [vmem:[#allocation5 + $0x1f0] sm:$0xff]
    %v110 = vld [vmem:[#allocation5 + $0x1f8] sm:$0xff]
    %v111 = vld [vmem:[%s2] sm:$0x3]
    %v113 = vlaneseq
    %v114 = vshrl.u32 %v113, 7
    %v115 = vsub.s32 0, %v114
    %v116 = vrot.slane %v111, %v115
    %v117 = vlaneseq
    %v118 = vshrl.u32 %v117, 7
    %v119 = vsub.s32 1, %v118
    %v120 = vrot.slane %v111, %v119
    %123 = vmatprep.subr.mxu0 %v48
    %124 = vmatpush1.xpose.msra.mxu0 %v47
    %125 = vmatprep.subr.mxu0 %v50
    %126 = vmatpush1.xpose.msra.mxu0 %v49
    %127 = vmatprep.subr.mxu0 %v52
    %128 = vmatpush1.xpose.msra.mxu0 %v51
    %129 = vmatprep.subr.mxu0 %v54
    %130 = vmatpush1.xpose.msra.mxu0 %v53
    %131 = vmatprep.subr.mxu0 %v56
    %132 = vmatpush1.xpose.msra.mxu0 %v55
    %133 = vmatprep.subr.mxu0 %v58
    %134 = vmatpush1.xpose.msra.mxu0 %v57
    %135 = vmatprep.subr.mxu0 %v60
    %136 = vmatpush1.xpose.msra.mxu0 %v59
    %137 = vmatprep.subr.mxu0 %v62
    %138 = vmatpush1.xpose.msra.mxu0 %v61
    %139 = vmatprep.subr.mxu0 %v64
    %140 = vmatpush1.xpose.msra.mxu0 %v63
    %141 = vmatprep.subr.mxu0 %v66
    %142 = vmatpush1.xpose.msra.mxu0 %v65
    %143 = vmatprep.subr.mxu0 %v68
    %144 = vmatpush1.xpose.msra.mxu0 %v67
    %145 = vmatprep.subr.mxu0 %v70
    %146 = vmatpush1.xpose.msra.mxu0 %v69
    %147 = vmatprep.subr.mxu0 %v72
    %148 = vmatpush1.xpose.msra.mxu0 %v71
    %149 = vmatprep.subr.mxu0 %v74
    %150 = vmatpush1.xpose.msra.mxu0 %v73
    %151 = vmatprep.subr.mxu0 %v76
    %152 = vmatpush1.xpose.msra.mxu0 %v75
    %153 = vmatprep.subr.mxu0 %v78
    %154 = vmatpush1.xpose.msra.mxu0 %v77
    %155 = vmatprep.subr.mxu0 %v80
    %156 = vmatpush1.xpose.msra.mxu0 %v79
    %157 = vmatprep.subr.mxu0 %v82
    %158 = vmatpush1.xpose.msra.mxu0 %v81
    %159 = vmatprep.subr.mxu0 %v84
    %160 = vmatpush1.xpose.msra.mxu0 %v83
    %161 = vmatprep.subr.mxu0 %v86
    %162 = vmatpush1.xpose.msra.mxu0 %v85
    %163 = vmatprep.subr.mxu0 %v88
    %164 = vmatpush1.xpose.msra.mxu0 %v87
    %165 = vmatprep.subr.mxu0 %v90
    %166 = vmatpush1.xpose.msra.mxu0 %v89
    %167 = vmatprep.subr.mxu0 %v92
    %168 = vmatpush1.xpose.msra.mxu0 %v91
    %169 = vmatprep.subr.mxu0 %v94
    %170 = vmatpush1.xpose.msra.mxu0 %v93
    %171 = vmatprep.subr.mxu0 %v96
    %172 = vmatpush1.xpose.msra.mxu0 %v95
    %173 = vmatprep.subr.mxu0 %v98
    %174 = vmatpush1.xpose.msra.mxu0 %v97
    %175 = vmatprep.subr.mxu0 %v100
    %176 = vmatpush1.xpose.msra.mxu0 %v99
    %177 = vmatprep.subr.mxu0 %v102
    %178 = vmatpush1.xpose.msra.mxu0 %v101
    %179 = vmatprep.subr.mxu0 %v104
    %180 = vmatpush1.xpose.msra.mxu0 %v103
    %181 = vmatprep.subr.mxu0 %v106
    %182 = vmatpush1.xpose.msra.mxu0 %v105
    %183 = vmatprep.subr.mxu0 %v108
    %184 = vmatpush1.xpose.msra.mxu0 %v107
    %185 = vmatprep.subr.mxu0 %v110
    %186 = vmatpush1.xpose.msra.mxu0 %v109
    %187 = vmatprep.mubr.f32.mxu0 %v44
    %188 = vmatmul.mubr.f32.gmra.mrb[0].mxu0 %v43
    %v189 = vpop.f32.mrb[0].mxu0
    %v190 = vadd.f32 %v116, %v189
    %v191 = vpop.f32.mrb[0].mxu0
    %v192 = vadd.f32 %v120, %v191
    %193 = vmatprep.mubr.f32.mxu0 %v46
    %194 = vmatmul.mubr.f32.gmra.mrb[0].mxu0 %v45
    %v195 = vpop.f32.mrb[0].mxu0
    %v196 = vadd.f32 %v116, %v195
    %v197 = vpop.f32.mrb[0].mxu0
    %v198 = vadd.f32 %v120, %v197
    %199 = vdwg.mxu0
    %200 = vst [vmem:[#allocation7] sm:$0xff] %v190
    %201 = vst [vmem:[#allocation7 + $0x8] sm:$0xff] %v192
    %202 = vst [vmem:[#allocation7 + $0x10] sm:$0xff] %v196
    %203 = vst [vmem:[#allocation7 + $0x18] sm:$0xff] %v198
    // Predicated region
    $region22: #{pallas_linear.1} parent=1 // pred_check
      _
    $region23: #{pallas_linear.1} parent=1 // pred_check_branch
      %205 = sbr.rel (0) target = $region25
    $region24: #{pallas_linear.1} parent=1 // pred_region
      %s207 = ssub.s32 512, 512
      %208 = vsyncadd [#allocation4], %s207
      %s209 = sshll.u32 [#allocation7], 4
      %s210 = int_to_ptr.vmem [resolvable:$true] %s209
      %215 = dma.vmem_to_hbm [thread:$0]  %s210, 512, %s3, [#allocation4], 256, 256, 16
    $region25: #{pallas_linear.1} parent=1 // pred_fallthru
      _
    // Predicated region
    $region26: #{pallas_linear.1} parent=1 // pred_check
      _
    $region27: #{pallas_linear.1} parent=1 // pred_check_branch
      %217 = sbr.rel (0) target = $region29
    $region28: #{pallas_linear.1} parent=1 // pred_region
      %218 = dma.done [#allocation4], 512
    $region29: #{pallas_linear.1} parent=1 // pred_fallthru
      _
    %219 = vsyncpa [#allocation3], 1
    %220 = vsyncpa [#allocation6], 1
    %221 = vsyncpa [#allocation4], 1

</llo_original>
